<compile_context>
chip_gen: v7x
topology: tpu7x:2x2x1
jax: 0.10.0
libtpu: 0.0.40
codegen_flags: <defaults>
</compile_context>

<pallas_src>
import functools

import jax
import jax.numpy as jnp
from jax.experimental import pallas as pl
from jax.experimental.pallas import tpu as pltpu


def channel_attention_kernel(x_ref, w1t_ref, w2t_ref, o_ref, acc_ref,
                             *, hw_total, hw_tile):
    """One (batch, hw-tile) grid step.

    x_ref:   (1, C, hw_tile)  input dtype (f32 / bf16)
    w1t_ref: (C, Ch)          f32  (fc1 weight, transposed)
    w2t_ref: (Ch, C)          f32  (fc2 weight, transposed)
    o_ref:   (1, 1, C)        output dtype
    acc_ref: (2, C)           f32 VMEM scratch; row 0 = running sum, row 1 = running max
    """
    t = pl.program_id(1)

    @pl.when(t == 0)
    def _init():
        acc_ref[0:1, :] = jnp.zeros_like(acc_ref[0:1, :])
        acc_ref[1:2, :] = jnp.full_like(acc_ref[1:2, :], -jnp.inf)

    x = x_ref[...].astype(jnp.float32)  # widen at load; accumulate in f32

    if hw_total % hw_tile != 0:
        # The last tile overhangs H*W; mask the padding lanes.
        lane = jax.lax.broadcasted_iota(jnp.int32, x.shape, dimension=2)
        valid = (t * hw_tile + lane) < hw_total
        x_sum = jnp.where(valid, x, 0.0)
        x_max = jnp.where(valid, x, -jnp.inf)
    else:
        x_sum = x
        x_max = x

    acc_ref[0:1, :] = acc_ref[0:1, :] + jnp.sum(x_sum, axis=-1)              # (1, C)
    acc_ref[1:2, :] = jnp.maximum(acc_ref[1:2, :], jnp.max(x_max, axis=-1))  # (1, C)

    @pl.when(t == pl.num_programs(1) - 1)
    def _finalize():
        # Turn the running sum into the mean in place; scratch rows are now [avg; max].
        acc_ref[0:1, :] = acc_ref[0:1, :] * (1.0 / float(hw_total))
        pooled = acc_ref[...]                                                   # (2, C)
        h = jnp.dot(pooled, w1t_ref[...], preferred_element_type=jnp.float32)   # (2, Ch)
        h = jnp.maximum(h, 0.0)
        y = jnp.dot(h, w2t_ref[...], preferred_element_type=jnp.float32)        # (2, C)
        out = jax.nn.sigmoid(y[0:1, :] + y[1:2, :])                             # (1, C)
        o_ref[...] = out.astype(o_ref.dtype).reshape(o_ref.shape)


def _pick_hw_tile(hw, c, itemsize):
    """Largest multiple-of-128 HW tile whose block stays ~<=1 MiB (or full HW)."""
    budget = 1 << 20
    tile = max(128, (budget // max(c * itemsize, 1)) // 128 * 128)
    if tile >= hw:
        return hw          # full extent: always layout-legal, single HW step
    return tile            # multiple of 128; remainder tile masked in-kernel


def channel_attention(x_nchw, w_fc1, w_fc2, hw_tile=None):
    """x_nchw: [B, C, H, W]; w_fc1: [C//16, C]; w_fc2: [C, C//16].
    Returns sigmoid attention weights of shape [B, C, 1, 1] (input dtype)."""
    B, C, H, W = x_nchw.shape
    Ch = w_fc1.shape[0]
    assert w_fc1.shape == (Ch, C) and w_fc2.shape == (C, Ch)

    HW = H * W
    x_flat = x_nchw.reshape(B, C, HW)                 # native dtype: no wrapper up-cast
    w1t = jnp.transpose(w_fc1).astype(jnp.float32)    # (C, Ch)
    w2t = jnp.transpose(w_fc2).astype(jnp.float32)    # (Ch, C)

    if hw_tile is None:
        hw_tile = _pick_hw_tile(HW, C, jnp.dtype(x_flat.dtype).itemsize)
    else:
        hw_tile = min(int(hw_tile), HW)
        if hw_tile != HW:
            assert hw_tile % 128 == 0, "hw_tile must be a multiple of 128 (or >= H*W)"
    num_hw_tiles = pl.cdiv(HW, hw_tile)

    kernel = functools.partial(channel_attention_kernel,
                               hw_total=HW, hw_tile=hw_tile)

    out = pl.pallas_call(
        kernel,
        out_shape=jax.ShapeDtypeStruct((B, 1, C), x_nchw.dtype),
        grid=(B, num_hw_tiles),
        in_specs=[
            pl.BlockSpec((1, C, hw_tile), lambda b, t: (b, 0, t)),
            pl.BlockSpec((C, Ch), lambda b, t: (0, 0)),
            pl.BlockSpec((Ch, C), lambda b, t: (0, 0)),
        ],
        out_specs=pl.BlockSpec((1, 1, C), lambda b, t: (b, 0, 0)),
        scratch_shapes=[
            pltpu.VMEM((2, C), jnp.float32),   # row 0: running sum, row 1: running max
        ],
        compiler_params=pltpu.CompilerParams(
            dimension_semantics=("parallel", "arbitrary")),
    )(x_flat, w1t, w2t)

    return out.reshape(B, C, 1, 1)


def reference(x_nchw, w_fc1, w_fc2):
    """Pure-JAX reference mirroring the PyTorch forward."""
    B, C, H, W = x_nchw.shape
    xf = x_nchw.astype(jnp.float32)
    avg = jnp.mean(xf, axis=(2, 3))   # (B, C)
    mx = jnp.max(xf, axis=(2, 3))     # (B, C)

    def mlp(v):
        h = jnp.maximum(v @ w_fc1.T.astype(jnp.float32), 0.0)
        return h @ w_fc2.T.astype(jnp.float32)

    out = jax.nn.sigmoid(mlp(avg) + mlp(mx))
    return out.astype(x_nchw.dtype).reshape(B, C, 1, 1)


if __name__ == "__main__":
    key = jax.random.PRNGKey(0)
    kx, k1, k2, kx2 = jax.random.split(key, 4)

    # The module hardcodes in_planes // 16, so C must be >= 16.
    B, C, H, W = 2, 32, 16, 16
    Ch = C // 16  # = 2

    x = jax.random.normal(kx, (B, C, H, W), dtype=jnp.float32)
    # Deterministic "conv" weights (1x1 convs == matmuls over channels).
    w_fc1 = jax.random.normal(k1, (Ch, C), dtype=jnp.float32) * 0.1  # fc1.weight[:, :, 0, 0]
    w_fc2 = jax.random.normal(k2, (C, Ch), dtype=jnp.float32) * 0.1  # fc2.weight[:, :, 0, 0]

    ref = reference(x, w_fc1, w_fc2)

    # 1) Streamed path: hw_tile=128 -> 2 HW grid steps (accumulate + finalize).
    out_stream = jax.block_until_ready(channel_attention(x, w_fc1, w_fc2, hw_tile=128))
    assert out_stream.shape == (B, C, 1, 1)
    assert jnp.allclose(out_stream, ref, atol=1e-5, rtol=1e-5), (
        f"streamed: max abs diff {jnp.max(jnp.abs(out_stream - ref))}")

    # 2) Default path: full H*W in a single step per batch.
    out_full = jax.block_until_ready(channel_attention(x, w_fc1, w_fc2))
    assert jnp.allclose(out_full, ref, atol=1e-5, rtol=1e-5), (
        f"full-tile: max abs diff {jnp.max(jnp.abs(out_full - ref))}")

    # 3) Ragged spatial extent (H*W=130 not a multiple of 128) -> masked remainder tile.
    x2 = jax.random.normal(kx2, (B, C, 10, 13), dtype=jnp.float32)
    ref2 = reference(x2, w_fc1, w_fc2)
    out_ragged = jax.block_until_ready(channel_attention(x2, w_fc1, w_fc2, hw_tile=128))
    assert jnp.allclose(out_ragged, ref2, atol=1e-5, rtol=1e-5), (
        f"ragged: max abs diff {jnp.max(jnp.abs(out_ragged - ref2))}")

    print("KERNEL_OK")
</pallas_src>

<mosaic_0001>
module attributes {stable_mosaic.version = 11 : i64} {
  func.func @channel_attention_kernel(%arg0: i32, %arg1: i32, %arg2: memref<1x32x128xf32, #tpu.memory_space<vmem>>, %arg3: memref<32x2xf32, #tpu.memory_space<vmem>>, %arg4: memref<2x32xf32, #tpu.memory_space<vmem>>, %arg5: memref<1x1x32xf32, #tpu.memory_space<vmem>>, %arg6: memref<2x32xf32, #tpu.memory_space<vmem>>) attributes {dimension_semantics = [#tpu.dimension_semantics<parallel>, #tpu.dimension_semantics<arbitrary>], iteration_bounds = array<i64: 2, 2>, scalar_prefetch = 0 : i64, scratch_operands = 1 : i64, tpu.core_type = #tpu.core_type<tc>, window_params = [{transform_indices = @transform_0, window_bounds = array<i64: 1, 32, 128>}, {pipeline_mode = #tpu.pipeline_mode<synchronous>, transform_indices = @transform_1, window_bounds = array<i64: 32, 2>}, {pipeline_mode = #tpu.pipeline_mode<synchronous>, transform_indices = @transform_2, window_bounds = array<i64: 2, 32>}, {transform_indices = @transform_3, window_bounds = array<i64: 1, 1, 32>}]} {
    %c0_i32 = arith.constant 0 : i32
    %0 = arith.cmpi eq, %arg1, %c0_i32 : i32
    %1 = arith.extui %0 : i1 to i32
    %c0_i32_0 = arith.constant 0 : i32
    %2 = arith.cmpi ne, %1, %c0_i32_0 : i32
    scf.if %2 {
      %cst_12 = arith.constant 0.000000e+00 : f32
      %15 = vector.broadcast %cst_12 : f32 to vector<1x32xf32>
      %c0_13 = arith.constant 0 : index
      %c0_14 = arith.constant 0 : index
      %16 = vector.load %arg6[%c0_13, %c0_14] : memref<2x32xf32, #tpu.memory_space<vmem>>, vector<1x32xf32>
      tpu.vector_store %arg6[%c0_13, %c0_14], %15 {strides = array<i32>} : memref<2x32xf32, #tpu.memory_space<vmem>>, vector<1x32xf32>,
      %cst_15 = arith.constant 0xFF800000 : f32
      %17 = vector.broadcast %cst_15 : f32 to vector<1x32xf32>
      %c1_16 = arith.constant 1 : index
      %c0_17 = arith.constant 0 : index
      %18 = vector.load %arg6[%c1_16, %c0_17] : memref<2x32xf32, #tpu.memory_space<vmem>>, vector<1x32xf32>
      tpu.vector_store %arg6[%c1_16, %c0_17], %17 {strides = array<i32>} : memref<2x32xf32, #tpu.memory_space<vmem>>, vector<1x32xf32>,
    } else {
    }
    %c0 = arith.constant 0 : index
    %c0_1 = arith.constant 0 : index
    %c0_2 = arith.constant 0 : index
    %3 = vector.load %arg2[%c0, %c0_1, %c0_2] : memref<1x32x128xf32, #tpu.memory_space<vmem>>, vector<1x32x128xf32>
    %c0_3 = arith.constant 0 : index
    %c0_4 = arith.constant 0 : index
    %4 = vector.load %arg6[%c0_3, %c0_4] : memref<2x32xf32, #tpu.memory_space<vmem>>, vector<1x32xf32>
    %cst = arith.constant dense<0.000000e+00> : vector<1x32xf32>
    %5 = vector.multi_reduction <add>, %3, %cst [2] : vector<1x32x128xf32> to vector<1x32xf32>
    %6 = arith.addf %4, %5 : vector<1x32xf32>
    %c0_5 = arith.constant 0 : index
    %c0_6 = arith.constant 0 : index
    %7 = vector.load %arg6[%c0_5, %c0_6] : memref<2x32xf32, #tpu.memory_space<vmem>>, vector<1x32xf32>
    tpu.vector_store %arg6[%c0_5, %c0_6], %6 {strides = array<i32>} : memref<2x32xf32, #tpu.memory_space<vmem>>, vector<1x32xf32>,
    %c1 = arith.constant 1 : index
    %c0_7 = arith.constant 0 : index
    %8 = vector.load %arg6[%c1, %c0_7] : memref<2x32xf32, #tpu.memory_space<vmem>>, vector<1x32xf32>
    %cst_8 = arith.constant dense<0xFF800000> : vector<1x32xf32>
    %9 = vector.multi_reduction <maximumf>, %3, %cst_8 [2] : vector<1x32x128xf32> to vector<1x32xf32>
    %10 = arith.maximumf %8, %9 : vector<1x32xf32>
    %c1_9 = arith.constant 1 : index
    %c0_10 = arith.constant 0 : index
    %11 = vector.load %arg6[%c1_9, %c0_10] : memref<2x32xf32, #tpu.memory_space<vmem>>, vector<1x32xf32>
    tpu.vector_store %arg6[%c1_9, %c0_10], %10 {strides = array<i32>} : memref<2x32xf32, #tpu.memory_space<vmem>>, vector<1x32xf32>,
    %c1_i32 = arith.constant 1 : i32
    %12 = arith.cmpi eq, %arg1, %c1_i32 : i32
    %13 = arith.extui %12 : i1 to i32
    %c0_i32_11 = arith.constant 0 : i32
    %14 = arith.cmpi ne, %13, %c0_i32_11 : i32
    scf.if %14 {
      %c0_12 = arith.constant 0 : index
      %c0_13 = arith.constant 0 : index
      %15 = vector.load %arg6[%c0_12, %c0_13] : memref<2x32xf32, #tpu.memory_space<vmem>>, vector<1x32xf32>
      %cst_14 = arith.constant 3.906250e-03 : f32
      %16 = vector.broadcast %cst_14 : f32 to vector<1x32xf32>
      %17 = arith.mulf %15, %16 : vector<1x32xf32>
      %c0_15 = arith.constant 0 : index
      %c0_16 = arith.constant 0 : index
      %18 = vector.load %arg6[%c0_15, %c0_16] : memref<2x32xf32, #tpu.memory_space<vmem>>, vector<1x32xf32>
      tpu.vector_store %arg6[%c0_15, %c0_16], %17 {strides = array<i32>} : memref<2x32xf32, #tpu.memory_space<vmem>>, vector<1x32xf32>,
      %c0_17 = arith.constant 0 : index
      %c0_18 = arith.constant 0 : index
      %19 = vector.load %arg6[%c0_17, %c0_18] : memref<2x32xf32, #tpu.memory_space<vmem>>, vector<2x32xf32>
      %c0_19 = arith.constant 0 : index
      %c0_20 = arith.constant 0 : index
      %20 = vector.load %arg3[%c0_19, %c0_20] : memref<32x2xf32, #tpu.memory_space<vmem>>, vector<32x2xf32>
      %cst_21 = arith.constant dense<0.000000e+00> : vector<2x2xf32>
      %21 = tpu.matmul %19, %20, %cst_21 {dimension_numbers = #tpu.dot_dimension_numbers<[1], [0], [0], [1], [0, 0, 1, 1], [], []>} : vector<2x32xf32>, vector<32x2xf32>, vector<2x2xf32> -> vector<2x2xf32>
      %cst_22 = arith.constant 0.000000e+00 : f32
      %22 = vector.broadcast %cst_22 : f32 to vector<2x2xf32>
      %23 = arith.maximumf %21, %22 : vector<2x2xf32>
      %c0_23 = arith.constant 0 : index
      %c0_24 = arith.constant 0 : index
      %24 = vector.load %arg4[%c0_23, %c0_24] : memref<2x32xf32, #tpu.memory_space<vmem>>, vector<2x32xf32>
      %cst_25 = arith.constant dense<0.000000e+00> : vector<2x32xf32>
      %25 = tpu.matmul %23, %24, %cst_25 {dimension_numbers = #tpu.dot_dimension_numbers<[1], [0], [0], [1], [0, 0, 1, 1], [], []>} : vector<2x2xf32>, vector<2x32xf32>, vector<2x32xf32> -> vector<2x32xf32>
      %26 = vector.extract_strided_slice %25 {offsets = [0, 0], sizes = [1, 32], strides = [1, 1]} : vector<2x32xf32> to vector<1x32xf32>
      %27 = vector.extract_strided_slice %25 {offsets = [1, 0], sizes = [1, 32], strides = [1, 1]} : vector<2x32xf32> to vector<1x32xf32>
      %28 = arith.addf %26, %27 : vector<1x32xf32>
      %29 = arith.negf %28 : vector<1x32xf32>
      %30 = math.exp %29 : vector<1x32xf32>
      %cst_26 = arith.constant 1.000000e+00 : f32
      %31 = vector.broadcast %cst_26 : f32 to vector<1x32xf32>
      %32 = arith.addf %31, %30 : vector<1x32xf32>
      %33 = arith.divf %31, %32 : vector<1x32xf32>
      %34 = vector.shape_cast %33 : vector<1x32xf32> to vector<1x1x32xf32>
      %c0_27 = arith.constant 0 : index
      %c0_28 = arith.constant 0 : index
      %c0_29 = arith.constant 0 : index
      %35 = vector.load %arg5[%c0_27, %c0_28, %c0_29] : memref<1x1x32xf32, #tpu.memory_space<vmem>>, vector<1x1x32xf32>
      tpu.vector_store %arg5[%c0_27, %c0_28, %c0_29], %34 {strides = array<i32>} : memref<1x1x32xf32, #tpu.memory_space<vmem>>, vector<1x1x32xf32>,
    } else {
    }
    return
  }
  func.func @transform_0(%arg0: i32, %arg1: i32) -> (i32, i32, i32) {
    %c0_i32 = arith.constant 0 : i32
    %c0_i32_0 = arith.constant 0 : i32
    return %arg0, %c0_i32, %arg1 : i32, i32, i32
  }
  func.func @transform_1(%arg0: i32, %arg1: i32) -> (i32, i32) {
    %c0_i32 = arith.constant 0 : i32
    %c0_i32_0 = arith.constant 0 : i32
    %c0_i32_1 = arith.constant 0 : i32
    return %c0_i32, %c0_i32_0 : i32, i32
  }
  func.func @transform_2(%arg0: i32, %arg1: i32) -> (i32, i32) {
    %c0_i32 = arith.constant 0 : i32
    %c0_i32_0 = arith.constant 0 : i32
    %c0_i32_1 = arith.constant 0 : i32
    return %c0_i32, %c0_i32_0 : i32, i32
  }
  func.func @transform_3(%arg0: i32, %arg1: i32) -> (i32, i32, i32) {
    %c0_i32 = arith.constant 0 : i32
    %c0_i32_0 = arith.constant 0 : i32
    %c0_i32_1 = arith.constant 0 : i32
    return %arg0, %c0_i32, %c0_i32_0 : i32, i32, i32
  }
}

</mosaic_0001>

<llo_original>
// kernel: tpu_custom_call.1
$region0: #{tpu_custom_call.1}
  #allocation0 [shape = 'u32[]', space=smem, size = 0x4, offset = 0x4, fixed_abs, tag = 'smem constant byte address 0x4 - core index']
  #allocation1 [shape = 'u32[144,128]{1,0:T(1,128)}', space=vmem, size = 0x12000, scoped, tag = 'internal scratch']
  #allocation2 [shape = 'f32[2,32]{1,0:T(2,128)}', space=vmem, size = 0x400, scoped, tag = 'scratch operand']
  %s0 = inlined_call_operand.hbm [shape: f32[2,32,256], index: 0, kind: input, shape index: {}]
  %s1 = inlined_call_operand.vmem [shape: f32[32,2], index: 1, kind: input, shape index: {}]
  %s2 = inlined_call_operand.vmem [shape: f32[2,32], index: 2, kind: input, shape index: {}]
  %s3 = inlined_call_operand.hbm [shape: f32[2,1,32], index: 3, kind: output, shape index: {}]
  %s4 = sld [smem:[#allocation0]]
  $region57: #{tpu_custom_call.1} parent=0
    _
  %s6 = ssub.s32 1, %s4
  %s7 = scalar_select 0, %s6, %s4
  $region1: #{tpu_custom_call.1} parent=0
    #allocation3 [shape = 'u8[32768]{0}', space=vmem, size = 0x8000, scoped, tag = 'input window, operand 0']
    #allocation4 [shape = 's32[2]{0}', space=sflag, size = 0x8, scoped, tag = 'scoped memory for tpu_custom_call.1']
    #allocation5 [shape = 's32[2]{0}', space=sflag, size = 0x8, scoped, tag = 'scoped memory for tpu_custom_call.1']
    #allocation6 [shape = 'u8[1024]{0}', space=vmem, size = 0x400, scoped, tag = 'output window, operand 0']
    %8 = vsyncpa [#allocation4], 0
    %s9 = scalar_lea.sflag [#allocation4], 1
    %10 = vsyncpa %s9, 0
    %11 = vsyncpa [#allocation5], 0
    %s12 = scalar_lea.sflag [#allocation5], 1
    %13 = vsyncpa %s12, 0
    loop: start=0, step=1, limit=6
    $region2: #{tpu_custom_call.1} parent=1 // loop_pre_header
      _
    $region3: #{tpu_custom_call.1} parent=1 // loop_header
      %s15 = sphi 0, %s19
      %p16 = scmp.ge.s32.totalorder %s15, 6
      %s22 = sphi 0, %s34
      %s23 = sphi 0, %s30
      %s24 = sphi 0, %s22
      %s25 = sphi 0, %s23
      %s26 = sphi 0, %s24
      %s27 = sphi 0, %s25
      %s39 = sphi 0, %s41
      %s42 = sphi 0, %s39
      %s43 = sphi 0, %s42
      %s59 = sphi 0, %s43
      %s63 = sphi 0, %s63
      %s65 = sphi 0, %s63
      %s66 = sphi 0, %s65
      %s80 = sphi 0, %s66
      %s84 = sphi 0, %s84
      %s86 = sphi 0, %s84
      %s87 = sphi 0, %s86
      %s101 = sphi 0, %s87
      %s107 = sphi 0, %s109
      %s110 = sphi 0, %s107
      %s111 = sphi 0, %s110
      %s127 = sphi 0, %s111
    $region4: #{tpu_custom_call.1} parent=1 // loop_header_branch
      %18 = sbr.rel (%p16) target = $region8
    $region5: #{tpu_custom_call.1} parent=1 // loop_body
      %s20 = ssub.s32 %s15, 1
      %s21 = ssub.s32 %s15, 2
      %s28 = sadd.s32 1, %s23
      %p29 = scmp.ge.s32.totalorder %s28, 2
      %s30 = scalar_select %p29, 0, %s28
      %s31 = sadd.s32 1, %s22
      %s32 = scalar_select %p29, %s31, %s22
      %p33 = scmp.ge.s32.totalorder %s32, 2
      %s34 = scalar_select %p33, 0, %s32
      %s35 = ssub.s32 %s22, %s34
      %s36 = ssub.s32 %s23, %s30
      %s37 = sor.u32 %s35, %s36
      %p38 = scmp.eq.s32.totalorder %s37, 0
      %s40 = sadd.s32 %s39, 1
      %s41 = scalar_select %p38, %s39, %s40
      %p44 = pneg %p38
      %p45 = scmp.eq.s32.totalorder %s15, 3
      %p46 = por %p44, %p45
      %p47 = scmp.ne.s32.totalorder %s39, %s42
      %p48 = scmp.eq.s32.totalorder %s15, 0
      %p49 = por %p47, %p48
      %p50 = scmp.ne.s32.totalorder %s39, %s42
      %p51 = scmp.eq.s32.totalorder %s20, 3
      %p52 = por %p50, %p51
      %p53 = scmp.ne.s32.totalorder %s42, %s43
      %p54 = scmp.eq.s32.totalorder %s20, 0
      %p55 = por %p53, %p54
      %p56 = scmp.ne.s32.totalorder %s42, %s43
      %p57 = scmp.eq.s32.totalorder %s21, 3
      %p58 = por %p56, %p57
      %p60 = scmp.ne.s32.totalorder %s43, %s59
      %p61 = scmp.eq.s32.totalorder %s21, 0
      %p62 = por %p60, %p61
      %s64 = sadd.s32 %s63, 1
      %p67 = scmp.eq.s32.totalorder %s15, 3
      %p68 = scmp.ne.s32.totalorder %s63, %s65
      %p69 = scmp.eq.s32.totalorder %s15, 0
      %p70 = por %p68, %p69
      %p71 = scmp.ne.s32.totalorder %s63, %s65
      %p72 = scmp.eq.s32.totalorder %s20, 3
      %p73 = por %p71, %p72
      %p74 = scmp.ne.s32.totalorder %s65, %s66
      %p75 = scmp.eq.s32.totalorder %s20, 0
      %p76 = por %p74, %p75
      %p77 = scmp.ne.s32.totalorder %s65, %s66
      %p78 = scmp.eq.s32.totalorder %s21, 3
      %p79 = por %p77, %p78
      %p81 = scmp.ne.s32.totalorder %s66, %s80
      %p82 = scmp.eq.s32.totalorder %s21, 0
      %p83 = por %p81, %p82
      %s85 = sadd.s32 %s84, 1
      %p88 = scmp.eq.s32.totalorder %s15, 3
      %p89 = scmp.ne.s32.totalorder %s84, %s86
      %p90 = scmp.eq.s32.totalorder %s15, 0
      %p91 = por %p89, %p90
      %p92 = scmp.ne.s32.totalorder %s84, %s86
      %p93 = scmp.eq.s32.totalorder %s20, 3
      %p94 = por %p92, %p93
      %p95 = scmp.ne.s32.totalorder %s86, %s87
      %p96 = scmp.eq.s32.totalorder %s20, 0
      %p97 = por %p95, %p96
      %p98 = scmp.ne.s32.totalorder %s86, %s87
      %p99 = scmp.eq.s32.totalorder %s21, 3
      %p100 = por %p98, %p99
      %p102 = scmp.ne.s32.totalorder %s87, %s101
      %p103 = scmp.eq.s32.totalorder %s21, 0
      %p104 = por %p102, %p103
      %s105 = ssub.s32 %s22, %s34
      %p106 = scmp.eq.s32.totalorder %s105, 0
      %s108 = sadd.s32 %s107, 1
      %s109 = scalar_select %p106, %s107, %s108
      %p112 = pneg %p106
      %p113 = scmp.eq.s32.totalorder %s15, 3
      %p114 = por %p112, %p113
      %p115 = scmp.ne.s32.totalorder %s107, %s110
      %p116 = scmp.eq.s32.totalorder %s15, 0
      %p117 = por %p115, %p116
      %p118 = scmp.ne.s32.totalorder %s107, %s110
      %p119 = scmp.eq.s32.totalorder %s20, 3
      %p120 = por %p118, %p119
      %p121 = scmp.ne.s32.totalorder %s110, %s111
      %p122 = scmp.eq.s32.totalorder %s20, 0
      %p123 = por %p121, %p122
      %p124 = scmp.ne.s32.totalorder %s110, %s111
      %p125 = scmp.eq.s32.totalorder %s21, 3
      %p126 = por %p124, %p125
      %p128 = scmp.ne.s32.totalorder %s111, %s127
      %p129 = scmp.eq.s32.totalorder %s21, 0
      %p130 = por %p128, %p129
      %p131 = scmp.le.s32.totalorder 1, %s15
      %p132 = scmp.lt.s32.totalorder %s15, 5
      %p133 = pnand %p131, %p132
      %p134 = pneg %p133
      // Predicated region
      $region9: #{tpu_custom_call.1} parent=5 // pred_check
        _
      $region10: #{tpu_custom_call.1} parent=5 // pred_check_branch
        %136 = sbr.rel (%p133) target = $region12
      $region11: #{tpu_custom_call.1} parent=5 // pred_region
        %s137 = ssub.s32 %s15, 1
        // Predicated region
        $region13: #{tpu_custom_call.1} parent=11 // pred_check
          %p138 = pneg %p76
        $region14: #{tpu_custom_call.1} parent=11 // pred_check_branch
          %140 = sbr.rel (%p138) target = $region16
        $region15: #{tpu_custom_call.1} parent=11 // pred_region
          _
        $region16: #{tpu_custom_call.1} parent=11 // pred_fallthru
          _
        // Predicated region
        $region17: #{tpu_custom_call.1} parent=11 // pred_check
          %p141 = pneg %p97
        $region18: #{tpu_custom_call.1} parent=11 // pred_check_branch
          %143 = sbr.rel (%p141) target = $region20
        $region19: #{tpu_custom_call.1} parent=11 // pred_region
          _
        $region20: #{tpu_custom_call.1} parent=11 // pred_fallthru
          _
      $region12: #{tpu_custom_call.1} parent=5 // pred_fallthru
        _
      %p144 = scmp.lt.s32.totalorder %s15, 4
      // Predicated region
      $region21: #{tpu_custom_call.1} parent=5 // pred_check
        %p145 = pneg %p144
      $region22: #{tpu_custom_call.1} parent=5 // pred_check_branch
        %147 = sbr.rel (%p145) target = $region24
      $region23: #{tpu_custom_call.1} parent=5 // pred_region
        // Predicated region
        $region25: #{tpu_custom_call.1} parent=23 // pred_check
          %p148 = pneg %p49
        $region26: #{tpu_custom_call.1} parent=23 // pred_check_branch
          %150 = sbr.rel (%p148) target = $region28
        $region27: #{tpu_custom_call.1} parent=23 // pred_region
          %s151 = sand.u32 %s39, 1
          %s152 = scalar_lea.sflag [#allocation4], %s151
          %s153 = sand.u32 %s39, 1
          %s154 = smul.addr %s153, 32
          %s155 = scalar_lea.vmem [#allocation3], %s154
          %s157 = ssub.s32 512, 512
          %158 = vsyncadd %s152, %s157
          %s159 = smul.addr %s22, 8
          %s160 = sadd.s32 %s23, %s159
          %s161 = smul.addr %s160, 128
          %s162 = scalar_lea.hbm %s0, %s161
          %s163 = sshll.u32 %s155, 4
          %s164 = int_to_ptr.vmem [resolvable:$true] %s163
          %169 = dma.hbm_to_vmem [thread:$0]  %s162, 512, %s164, %s152, 256, 128, 8
        $region28: #{tpu_custom_call.1} parent=23 // pred_fallthru
          _
      $region24: #{tpu_custom_call.1} parent=5 // pred_fallthru
        _
      %p170 = scmp.le.s32.totalorder 1, %s15
      %p171 = scmp.lt.s32.totalorder %s15, 5
      %p172 = pnand %p170, %p171
      %p173 = pneg %p172
      // Predicated region
      $region29: #{tpu_custom_call.1} parent=5 // pred_check
        _
      $region30: #{tpu_custom_call.1} parent=5 // pred_check_branch
        %175 = sbr.rel (%p172) target = $region32
      $region31: #{tpu_custom_call.1} parent=5 // pred_region
        %s176 = ssub.s32 %s15, 1
        %s177 = sand.u32 %s42, 1
        %s178 = scalar_lea.sflag [#allocation4], %s177
        %s179 = sand.u32 %s42, 1
        %s180 = smul.addr %s179, 32
        %s181 = scalar_lea.vmem [#allocation3], %s180
        // Predicated region
        $region33: #{tpu_custom_call.1} parent=31 // pred_check
          %p182 = pneg %p55
        $region34: #{tpu_custom_call.1} parent=31 // pred_check_branch
          %184 = sbr.rel (%p182) target = $region36
        $region35: #{tpu_custom_call.1} parent=31 // pred_region
          %185 = dma.done %s178, 512
        $region36: #{tpu_custom_call.1} parent=31 // pred_fallthru
          _
        %s186 = sand.u32 %s42, 1
        %s187 = scalar_lea.sflag [#allocation4], %s186
        %s188 = sand.u32 %s42, 1
        %s189 = smul.addr %s188, 32
        %s190 = scalar_lea.vmem [#allocation3], %s189
        %p191 = pneg %p55
        %p192 = pneg %p52
        %p193 = pneg %p76
        %p194 = pneg %p73
        %p195 = pneg %p97
        %p196 = pneg %p94
        %p197 = pneg %p123
        %p198 = pneg %p120
        %s199 = sand.u32 %s110, 1
        %s200 = scalar_lea.sflag [#allocation5], %s199
        %s201 = sand.u32 %s110, 1
        %s202 = scalar_lea.vmem [#allocation6], %s201
        %p203 = scmp.eq.s32.totalorder %s25, 0
        // Predicated region
        $region37: #{tpu_custom_call.1} parent=31 // pred_check
          %p204 = pneg %p203
        $region38: #{tpu_custom_call.1} parent=31 // pred_check_branch
          %206 = sbr.rel (%p204) target = $region40
        $region39: #{tpu_custom_call.1} parent=31 // pred_region
          %vm207 = vcmask 253952
          %208 = vst.msk [vmem:[#allocation2] sm:$0x1] %vm207, 0.0
          %209 = vst.msk [vmem:[#allocation2 + $0x1] sm:$0x1] %vm207, -inf
        $region40: #{tpu_custom_call.1} parent=31 // pred_fallthru
          _
        %v210 = vld [vmem:[%s181] sm:$0xff]
        %v211 = vld [vmem:[%s181 + $0x8] sm:$0xff]
        %v212 = vld [vmem:[%s181 + $0x10] sm:$0xff]
        %v213 = vld [vmem:[%s181 + $0x18] sm:$0xff]
        %v214 = vld [vmem:[#allocation2] sm:$0x1]
        %215 = vadd.xlane.f32.xlu0 %v210
        %v216 = vpop.xlane.xlu0 %215
        %217 = vadd.xlane.f32.xlu0 %v211
        %v218 = vpop.xlane.xlu0 %217
        %219 = vadd.xlane.f32.xlu0 %v212
        %v220 = vpop.xlane.xlu0 %219
        %221 = vadd.xlane.f32.xlu0 %v213
        %v222 = vpop.xlane.xlu0 %221
        %v227 = vlaneseq
        %v228 = vand.u32 %v227, 127
        %v229 = vlaneseq
        %v230 = vshrl.u32 %v229, 7
        %v231 = vsub.s32 %v228, %v230
        %v232 = vrot.slane %v216, %v231
        %v233 = vadd.s32 %v228, 4294967288
        %v234 = vlaneseq
        %v235 = vshrl.u32 %v234, 7
        %v236 = vsub.s32 %v233, %v235
        %v237 = vrot.slane %v218, %v236
        %vm238 = vcmask 130112
        %v239 = vsel %vm238, %v237, %v232
        %v240 = vadd.s32 %v228, 4294967280
        %v241 = vlaneseq
        %v242 = vshrl.u32 %v241, 7
        %v243 = vsub.s32 %v240, %v242
        %v244 = vrot.slane %v220, %v243
        %vm245 = vcmask 195712
        %v246 = vsel %vm245, %v244, %v239
        %v247 = vadd.s32 %v228, 4294967272
        %v248 = vlaneseq
        %v249 = vshrl.u32 %v248, 7
        %v250 = vsub.s32 %v247, %v249
        %v251 = vrot.slane %v222, %v250
        %vm252 = vcmask 261312
        %v253 = vsel %vm252, %v251, %v246
        %v255 = vadd.f32 %v214, %v253
        %vm256 = vcmask 253952
        %257 = vst.msk [vmem:[#allocation2] sm:$0x1] %vm256, %v255
        %v258 = vld [vmem:[#allocation2 + $0x1] sm:$0x1]
        %259 = vmax.xlane.f32.xlu0 %v210
        %v260 = vpop.xlane.xlu0 %259
        %261 = vmax.xlane.f32.xlu0 %v211
        %v262 = vpop.xlane.xlu0 %261
        %263 = vmax.xlane.f32.xlu0 %v212
        %v264 = vpop.xlane.xlu0 %263
        %265 = vmax.xlane.f32.xlu0 %v213
        %v266 = vpop.xlane.xlu0 %265
        %v271 = vlaneseq
        %v272 = vshrl.u32 %v271, 7
        %v273 = vsub.s32 %v228, %v272
        %v274 = vrot.slane %v260, %v273
        %v275 = vlaneseq
        %v276 = vshrl.u32 %v275, 7
        %v277 = vsub.s32 %v233, %v276
        %v278 = vrot.slane %v262, %v277
        %v279 = vsel %vm238, %v278, %v274
        %v280 = vlaneseq
        %v281 = vshrl.u32 %v280, 7
        %v282 = vsub.s32 %v240, %v281
        %v283 = vrot.slane %v264, %v282
        %v284 = vsel %vm245, %v283, %v279
        %v285 = vlaneseq
        %v286 = vshrl.u32 %v285, 7
        %v287 = vsub.s32 %v247, %v286
        %v288 = vrot.slane %v266, %v287
        %v289 = vsel %vm252, %v288, %v284
        %v291 = vmax.f32 %v258, %v289
        %292 = vst.msk [vmem:[#allocation2 + $0x1] sm:$0x1] %vm256, %v291
        %p293 = scmp.eq.s32.totalorder %s25, 1
        // Predicated region
        $region41: #{tpu_custom_call.1} parent=31 // pred_check
          %p294 = pneg %p293
        $region42: #{tpu_custom_call.1} parent=31 // pred_check_branch
          %296 = sbr.rel (%p294) target = $region44
        $region43: #{tpu_custom_call.1} parent=31 // pred_region
          %v297 = vld [vmem:[#allocation2] sm:$0x1]
          %v298 = vmul.f32 %v297, 0.00390625
          %299 = vst.msk [vmem:[#allocation2] sm:$0x1] %vm256, %v298
          %v300 = vld [vmem:[#allocation2] sm:$0x3]
          %v301 = vld [vmem:[%s1] sm:$0xff]
          %v302 = vld [vmem:[%s1 + $0x8] sm:$0xff]
          %v303 = vld [vmem:[%s1 + $0x10] sm:$0xff]
          %v304 = vld [vmem:[%s1 + $0x18] sm:$0xff]
          %vm305 = vcmask 261120
          %v307 = vsel %vm305, %v300, 0
          %309 = vmatprep.subr.mxu0 0.0
          %310 = vmatpush1.msra.mxu0 %v301
          %311 = vmatprep.subr.mxu0 0.0
          %312 = vmatpush1.msra.mxu0 %v302
          %313 = vmatprep.subr.mxu0 0.0
          %314 = vmatpush1.msra.mxu0 %v303
          %315 = vmatprep.subr.mxu0 0.0
          %316 = vmatpush1.msra.mxu0 %v304
          %317 = vmatprep.subr.mxu0 0.0
          %318 = vmatpush1.msra.mxu0 0.0
          %319 = vmatprep.subr.mxu0 0.0
          %320 = vmatpush1.msra.mxu0 0.0
          %321 = vmatprep.subr.mxu0 0.0
          %322 = vmatpush1.msra.mxu0 0.0
          %323 = vmatprep.subr.mxu0 0.0
          %324 = vmatpush1.msra.mxu0 0.0
          %325 = vmatprep.subr.mxu0 0.0
          %326 = vmatpush1.msra.mxu0 0.0
          %327 = vmatprep.subr.mxu0 0.0
          %328 = vmatpush1.msra.mxu0 0.0
          %329 = vmatprep.subr.mxu0 0.0
          %330 = vmatpush1.msra.mxu0 0.0
          %331 = vmatprep.subr.mxu0 0.0
          %332 = vmatpush1.msra.mxu0 0.0
          %333 = vmatprep.subr.mxu0 0.0
          %334 = vmatpush1.msra.mxu0 0.0
          %335 = vmatprep.subr.mxu0 0.0
          %336 = vmatpush1.msra.mxu0 0.0
          %337 = vmatprep.subr.mxu0 0.0
          %338 = vmatpush1.msra.mxu0 0.0
          %339 = vmatprep.subr.mxu0 0.0
          %340 = vmatpush1.msra.mxu0 0.0
          %341 = vmatprep.subr.mxu0 0.0
          %342 = vmatpush1.msra.mxu0 0.0
          %343 = vmatprep.subr.mxu0 0.0
          %344 = vmatpush1.msra.mxu0 0.0
          %345 = vmatprep.subr.mxu0 0.0
          %346 = vmatpush1.msra.mxu0 0.0
          %347 = vmatprep.subr.mxu0 0.0
          %348 = vmatpush1.msra.mxu0 0.0
          %349 = vmatprep.subr.mxu0 0.0
          %350 = vmatpush1.msra.mxu0 0.0
          %351 = vmatprep.subr.mxu0 0.0
          %352 = vmatpush1.msra.mxu0 0.0
          %353 = vmatprep.subr.mxu0 0.0
          %354 = vmatpush1.msra.mxu0 0.0
          %355 = vmatprep.subr.mxu0 0.0
          %356 = vmatpush1.msra.mxu0 0.0
          %357 = vmatprep.subr.mxu0 0.0
          %358 = vmatpush1.msra.mxu0 0.0
          %359 = vmatprep.subr.mxu0 0.0
          %360 = vmatpush1.msra.mxu0 0.0
          %361 = vmatprep.subr.mxu0 0.0
          %362 = vmatpush1.msra.mxu0 0.0
          %363 = vmatprep.subr.mxu0 0.0
          %364 = vmatpush1.msra.mxu0 0.0
          %365 = vmatprep.subr.mxu0 0.0
          %366 = vmatpush1.msra.mxu0 0.0
          %367 = vmatprep.subr.mxu0 0.0
          %368 = vmatpush1.msra.mxu0 0.0
          %369 = vmatprep.subr.mxu0 0.0
          %370 = vmatpush1.msra.mxu0 0.0
          %371 = vmatprep.subr.mxu0 0.0
          %372 = vmatpush1.msra.mxu0 0.0
          %373 = vmatprep.mubr.f32.mxu0 0.0
          %374 = vmatmul.mubr.f32.gmra.mrb[0].mxu0 %v307
          %v375 = vpop.f32.mrb[0].mxu0
          %v376 = vadd.f32 0.0, %v375
          %v377 = vpop.f32.mrb[0].mxu0
          %378 = vdwg.mxu0
          %v379 = vmax.f32 %v376, 0.0
          %v380 = vld [vmem:[%s2] sm:$0x3]
          %vm381 = vcmask 15360
          %v383 = vsel %vm381, %v379, 0
          %vm385 = vcmask 1041408
          %v387 = vsel %vm385, %v380, 0
          %389 = vmatprep.subr.mxu0 0.0
          %390 = vmatpush1.msra.mxu0 %v387
          %391 = vmatprep.subr.mxu0 0.0
          %392 = vmatpush1.msra.mxu0 0.0
          %393 = vmatprep.subr.mxu0 0.0
          %394 = vmatpush1.msra.mxu0 0.0
          %395 = vmatprep.subr.mxu0 0.0
          %396 = vmatpush1.msra.mxu0 0.0
          %397 = vmatprep.subr.mxu0 0.0
          %398 = vmatpush1.msra.mxu0 0.0
          %399 = vmatprep.subr.mxu0 0.0
          %400 = vmatpush1.msra.mxu0 0.0
          %401 = vmatprep.subr.mxu0 0.0
          %402 = vmatpush1.msra.mxu0 0.0
          %403 = vmatprep.subr.mxu0 0.0
          %404 = vmatpush1.msra.mxu0 0.0
          %405 = vmatprep.subr.mxu0 0.0
          %406 = vmatpush1.msra.mxu0 0.0
          %407 = vmatprep.subr.mxu0 0.0
          %408 = vmatpush1.msra.mxu0 0.0
          %409 = vmatprep.subr.mxu0 0.0
          %410 = vmatpush1.msra.mxu0 0.0
          %411 = vmatprep.subr.mxu0 0.0
          %412 = vmatpush1.msra.mxu0 0.0
          %413 = vmatprep.subr.mxu0 0.0
          %414 = vmatpush1.msra.mxu0 0.0
          %415 = vmatprep.subr.mxu0 0.0
          %416 = vmatpush1.msra.mxu0 0.0
          %417 = vmatprep.subr.mxu0 0.0
          %418 = vmatpush1.msra.mxu0 0.0
          %419 = vmatprep.subr.mxu0 0.0
          %420 = vmatpush1.msra.mxu0 0.0
          %421 = vmatprep.subr.mxu0 0.0
          %422 = vmatpush1.msra.mxu0 0.0
          %423 = vmatprep.subr.mxu0 0.0
          %424 = vmatpush1.msra.mxu0 0.0
          %425 = vmatprep.subr.mxu0 0.0
          %426 = vmatpush1.msra.mxu0 0.0
          %427 = vmatprep.subr.mxu0 0.0
          %428 = vmatpush1.msra.mxu0 0.0
          %429 = vmatprep.subr.mxu0 0.0
          %430 = vmatpush1.msra.mxu0 0.0
          %431 = vmatprep.subr.mxu0 0.0
          %432 = vmatpush1.msra.mxu0 0.0
          %433 = vmatprep.subr.mxu0 0.0
          %434 = vmatpush1.msra.mxu0 0.0
          %435 = vmatprep.subr.mxu0 0.0
          %436 = vmatpush1.msra.mxu0 0.0
          %437 = vmatprep.subr.mxu0 0.0
          %438 = vmatpush1.msra.mxu0 0.0
          %439 = vmatprep.subr.mxu0 0.0
          %440 = vmatpush1.msra.mxu0 0.0
          %441 = vmatprep.subr.mxu0 0.0
          %442 = vmatpush1.msra.mxu0 0.0
          %443 = vmatprep.subr.mxu0 0.0
          %444 = vmatpush1.msra.mxu0 0.0
          %445 = vmatprep.subr.mxu0 0.0
          %446 = vmatpush1.msra.mxu0 0.0
          %447 = vmatprep.subr.mxu0 0.0
          %448 = vmatpush1.msra.mxu0 0.0
          %449 = vmatprep.subr.mxu0 0.0
          %450 = vmatpush1.msra.mxu0 0.0
          %451 = vmatprep.subr.mxu0 0.0
          %452 = vmatpush1.msra.mxu0 0.0
          %453 = vmatprep.mubr.f32.mxu0 0.0
          %454 = vmatmul.mubr.f32.gmra.mrb[0].mxu0 %v383
          %v455 = vpop.f32.mrb[0].mxu0
          %v456 = vadd.f32 0.0, %v455
          %v457 = vpop.f32.mrb[0].mxu0
          %458 = vdwg.mxu0
          %v460 = vrot.slane %v456, 1
          %v462 = vadd.f32 %v456, %v460
          %v463 = vxor.u32 %v462, 2147483648
          %v464 = vmul.f32 %v463, 1.442695
          %v465 = vpow.pop %v464
          %v466 = vadd.f32 %v465, 1.0
          %v467 = vrcp.pop %v466
          %v468 = vmul.f32 1.0, %v467
          %469 = vst.msk [vmem:[%s202] sm:$0x1] %vm256, %v468
        $region44: #{tpu_custom_call.1} parent=31 // pred_fallthru
          _
        %s470 = sand.u32 %s110, 1
        %s471 = scalar_lea.sflag [#allocation5], %s470
        %s472 = sand.u32 %s110, 1
        %s473 = scalar_lea.vmem [#allocation6], %s472
        // Predicated region
        $region45: #{tpu_custom_call.1} parent=31 // pred_check
          %p474 = pneg %p120
        $region46: #{tpu_custom_call.1} parent=31 // pred_check_branch
          %476 = sbr.rel (%p474) target = $region48
        $region47: #{tpu_custom_call.1} parent=31 // pred_region
          %s478 = ssub.s32 16, 16
          %479 = vsyncadd %s471, %s478
          %s480 = smul.addr %s24, 16
          %s481 = scalar_lea.hbm %s3, %s480
          %s483 = sshll.u32 %s473, 4
          %s484 = int_to_ptr.vmem [resolvable:$true] %s483
          %486 = dma.vmem_to_hbm [thread:$0]  %s484, 16, %s481, %s471
        $region48: #{tpu_custom_call.1} parent=31 // pred_fallthru
          _
      $region32: #{tpu_custom_call.1} parent=5 // pred_fallthru
        _
      %p487 = scmp.le.s32.totalorder 2, %s15
      // Predicated region
      $region49: #{tpu_custom_call.1} parent=5 // pred_check
        %p488 = pneg %p487
      $region50: #{tpu_custom_call.1} parent=5 // pred_check_branch
        %490 = sbr.rel (%p488) target = $region52
      $region51: #{tpu_custom_call.1} parent=5 // pred_region
        %s491 = ssub.s32 %s15, 2
        // Predicated region
        $region53: #{tpu_custom_call.1} parent=51 // pred_check
          %p492 = pneg %p126
        $region54: #{tpu_custom_call.1} parent=51 // pred_check_branch
          %494 = sbr.rel (%p492) target = $region56
        $region55: #{tpu_custom_call.1} parent=51 // pred_region
          %s495 = sand.u32 %s111, 1
          %s496 = scalar_lea.sflag [#allocation5], %s495
          %s497 = sand.u32 %s111, 1
          %s498 = scalar_lea.vmem [#allocation6], %s497
          %499 = dma.done %s496, 16
        $region56: #{tpu_custom_call.1} parent=51 // pred_fallthru
          _
      $region52: #{tpu_custom_call.1} parent=5 // pred_fallthru
        _
    $region6: #{tpu_custom_call.1} parent=1 // loop_footer
      %s19 = sadd.s32 1, %s15
    $region7: #{tpu_custom_call.1} parent=1 // loop_footer_branch
      %14 = sbr.rel target = $region3
    $region8: #{tpu_custom_call.1} parent=1 // loop_exit
      _
    %500 = vsyncpa [#allocation4], 1
    %s501 = scalar_lea.sflag [#allocation4], 1
    %502 = vsyncpa %s501, 1
    %503 = vsyncpa [#allocation5], 1
    %s504 = scalar_lea.sflag [#allocation5], 1
    %505 = vsyncpa %s504, 1

</llo_original>
